<compile_context>
chip_gen: v7x
topology: tpu7x:2x2x1
jax: 0.10.0
libtpu: 0.0.40
codegen_flags: <defaults>
</compile_context>

<pallas_src>
import jax
import jax.numpy as jnp
from jax.experimental import pallas as pl
from jax.experimental.pallas import tpu as pltpu


def fused_attention_classifier_kernel(
    x_ref,    # (TB, S*Din) lane-dense batch tile of inputs
    w1_ref,   # (S*Din, S*H) block-diagonal attention.fc weight
    b1_ref,   # (1, S*H)     attention.fc bias, tiled per position
    wa_ref,   # (S*H, S)     block-diagonal attention.attn_weights weight
    ba_ref,   # (1, S)       attention.attn_weights bias, tiled per position
    exp_ref,  # (S, S*H)     0/1 expansion matrix: attn (TB,S) -> (TB,S*H)
    w2_ref,   # (S*H, C)     classifier weight (torch .view(batch,-1) row order)
    b2_ref,   # (1, C)       classifier bias
    out_ref,  # (TB, C)      logits
):
    x = x_ref[...]

    # fc for all S positions in one MXU pass (block-diagonal weight, f32 accumulation).
    hidden = jnp.dot(x, w1_ref[...], preferred_element_type=jnp.float32) + b1_ref[...]  # (TB, S*H)

    # Attention scores for all positions, lane-packed (TB, S).
    th = jnp.tanh(hidden)
    scores = (
        jnp.dot(th.astype(wa_ref.dtype), wa_ref[...], preferred_element_type=jnp.float32)
        + ba_ref[...]
    )                                                                                    # (TB, S)

    # Softmax over the sequence (lane) axis — single max/exp/sum reduce per row.
    m = jnp.max(scores, axis=-1, keepdims=True)                                          # (TB, 1)
    e = jnp.exp(scores - m)                                                               # (TB, S)
    denom = jnp.sum(e, axis=-1, keepdims=True)                                            # (TB, 1)
    attn = e * pl.reciprocal(denom, approx=True)                                          # EUP recip

    # Broadcast attn[b, s] across the H lanes of position s via a tiny 0/1 matmul,
    # then weight the PRE-tanh hidden (torch semantics) and run the classifier.
    attn_exp = jnp.dot(
        attn.astype(exp_ref.dtype), exp_ref[...], preferred_element_type=jnp.float32
    )                                                                                     # (TB, S*H)
    weighted = attn_exp * hidden                                                          # (TB, S*H)
    logits = (
        jnp.dot(weighted.astype(w2_ref.dtype), w2_ref[...], preferred_element_type=jnp.float32)
        + b2_ref[...]
    )
    out_ref[...] = logits.astype(out_ref.dtype)


def _round_up(n, m):
    return ((n + m - 1) // m) * m


def attention_classifier_forward(inputs, params, *, block_b=None, use_bf16=False):
    """Fused forward pass. inputs: (B, S, Din) f32; returns logits (B, C) f32."""
    w1, b1, wa, ba, w2, b2 = params
    B, S, Din = inputs.shape
    H = w1.shape[1]
    C = w2.shape[1]
    assert w2.shape[0] == S * H, "classifier expects hidden_size * seq_len inputs"

    f32 = jnp.float32
    eye_s = jnp.eye(S, dtype=f32)

    # Host-side weight packing (cheap, constant-foldable under jit):
    x_flat = inputs.reshape(B, S * Din)                 # row-major: index s*Din + d
    w1_bd = jnp.kron(eye_s, w1)                         # (S*Din, S*H) block diagonal
    b1_t = jnp.tile(b1, (1, S))                         # (1, S*H)
    wa_bd = jnp.kron(eye_s, wa.T)                       # (S*H, S)   block diagonal column
    ba_t = jnp.tile(ba, (1, S))                         # (1, S)
    expand = jnp.kron(eye_s, jnp.ones((1, H), f32))     # (S, S*H)   attn broadcast matrix
    w2_m = w2                                           # (S*H, C)   torch .view(b,-1) order

    if use_bf16:
        # Bandwidth option (v5e): bf16 operands, f32 MXU accumulation. Not bit-exact.
        bf16 = jnp.bfloat16
        x_flat, w1_bd, wa_bd, expand, w2_m = (
            x_flat.astype(bf16), w1_bd.astype(bf16), wa_bd.astype(bf16),
            expand.astype(bf16), w2_m.astype(bf16),
        )

    # Batch tiling: tiny batches run in one step; otherwise >= 4 8-aligned tiles
    # (v7x megacore sharding + pipelining), capped at 512 rows. At 512 rows the
    # lane-dense x tile is 512*S*Din*4 B (~0.33 MiB) per buffer; with the weight
    # blocks and the (TB, S*H) intermediates this stays far inside even v5e's
    # 16 MiB scoped-VMEM default.
    if block_b is None:
        if B < 64:
            block_b = B
        else:
            block_b = min(512, _round_up(pl.cdiv(B, 4), 8))
    num_blocks = pl.cdiv(B, block_b)
    Bp = num_blocks * block_b
    if Bp != B:
        x_flat = jnp.pad(x_flat, ((0, Bp - B), (0, 0)))  # zero rows: harmless, sliced off

    const = lambda b: (0, 0)  # weights: constant index_map -> fetched once, VMEM-resident
    logits = pl.pallas_call(
        fused_attention_classifier_kernel,
        out_shape=jax.ShapeDtypeStruct((Bp, C), jnp.float32),
        grid=(num_blocks,),
        in_specs=[
            pl.BlockSpec((block_b, S * Din), lambda b: (b, 0)),
            pl.BlockSpec((S * Din, S * H), const),
            pl.BlockSpec((1, S * H), const),
            pl.BlockSpec((S * H, S), const),
            pl.BlockSpec((1, S), const),
            pl.BlockSpec((S, S * H), const),
            pl.BlockSpec((S * H, C), const),
            pl.BlockSpec((1, C), const),
        ],
        out_specs=pl.BlockSpec((block_b, C), lambda b: (b, 0)),
        compiler_params=pltpu.CompilerParams(dimension_semantics=("parallel",)),
    )(x_flat, w1_bd, b1_t, wa_bd, ba_t, expand, w2_m, b2)
    return logits[:B]


def init_params(key, input_size, hidden_size, num_classes, seq_len=10):
    """Deterministic init mimicking torch.nn.Linear's U(-1/sqrt(fan_in), 1/sqrt(fan_in))."""
    keys = jax.random.split(key, 6)

    def lin(kw, kb, fan_in, fan_out):
        bound = 1.0 / (fan_in ** 0.5)
        w = jax.random.uniform(kw, (fan_in, fan_out), jnp.float32, -bound, bound)
        b = jax.random.uniform(kb, (1, fan_out), jnp.float32, -bound, bound)
        return w, b

    w1, b1 = lin(keys[0], keys[1], input_size, hidden_size)             # attention.fc
    wa_col, ba = lin(keys[2], keys[3], hidden_size, 1)                  # attention.attn_weights
    wa = wa_col.T                                                       # (1, H) row, torch layout
    w2, b2 = lin(keys[4], keys[5], hidden_size * seq_len, num_classes)  # classifier fc
    return (w1, b1, wa, ba, w2, b2)


def reference_forward(inputs, params):
    """Pure-JAX reference mirroring the PyTorch module exactly."""
    w1, b1, wa, ba, w2, b2 = params
    x = inputs @ w1 + b1                        # (B, S, H)
    scores = jnp.tanh(x) @ wa.T + ba            # (B, S, 1)
    attn = jax.nn.softmax(scores, axis=1)
    weighted = attn * x                         # weights the PRE-tanh hidden
    flat = weighted.reshape(weighted.shape[0], -1)
    return flat @ w2 + b2


if __name__ == "__main__":
    key = jax.random.PRNGKey(0)
    k_in, k_p = jax.random.split(key)

    # Shapes implied by the module: seq length MUST be 10 (classifier fc expects hidden*10).
    B, S, Din, H, C = 2, 10, 16, 32, 8
    x = jax.random.normal(k_in, (B, S, Din), dtype=jnp.float32)
    params = init_params(k_p, Din, H, C, seq_len=S)

    logits = attention_classifier_forward(x, params)
    logits = jax.block_until_ready(logits)

    ref = reference_forward(x, params)
    assert logits.shape == (B, C)
    # Tolerance covers the approx (EUP) reciprocal in the softmax (~2^-12 relative error).
    assert jnp.allclose(logits, ref, atol=2e-3, rtol=2e-3), "mismatch vs JAX reference"
    print("KERNEL_OK")
</pallas_src>

<mosaic_0001>
module attributes {stable_mosaic.version = 11 : i64} {
  func.func @fused_attention_classifier_kernel(%arg0: i32, %arg1: memref<2x160xf32, #tpu.memory_space<vmem>>, %arg2: memref<160x320xf32, #tpu.memory_space<vmem>>, %arg3: memref<1x320xf32, #tpu.memory_space<vmem>>, %arg4: memref<320x10xf32, #tpu.memory_space<vmem>>, %arg5: memref<1x10xf32, #tpu.memory_space<vmem>>, %arg6: memref<10x320xf32, #tpu.memory_space<vmem>>, %arg7: memref<320x8xf32, #tpu.memory_space<vmem>>, %arg8: memref<1x8xf32, #tpu.memory_space<vmem>>, %arg9: memref<2x8xf32, #tpu.memory_space<vmem>>) attributes {dimension_semantics = [#tpu.dimension_semantics<parallel>], iteration_bounds = array<i64: 1>, scalar_prefetch = 0 : i64, scratch_operands = 0 : i64, tpu.core_type = #tpu.core_type<tc>, window_params = [{transform_indices = @transform_0, window_bounds = array<i64: 2, 160>}, {pipeline_mode = #tpu.pipeline_mode<synchronous>, transform_indices = @transform_1, window_bounds = array<i64: 160, 320>}, {pipeline_mode = #tpu.pipeline_mode<synchronous>, transform_indices = @transform_2, window_bounds = array<i64: 1, 320>}, {pipeline_mode = #tpu.pipeline_mode<synchronous>, transform_indices = @transform_3, window_bounds = array<i64: 320, 10>}, {pipeline_mode = #tpu.pipeline_mode<synchronous>, transform_indices = @transform_4, window_bounds = array<i64: 1, 10>}, {pipeline_mode = #tpu.pipeline_mode<synchronous>, transform_indices = @transform_5, window_bounds = array<i64: 10, 320>}, {pipeline_mode = #tpu.pipeline_mode<synchronous>, transform_indices = @transform_6, window_bounds = array<i64: 320, 8>}, {pipeline_mode = #tpu.pipeline_mode<synchronous>, transform_indices = @transform_7, window_bounds = array<i64: 1, 8>}, {transform_indices = @transform_8, window_bounds = array<i64: 2, 8>}]} {
    %c0 = arith.constant 0 : index
    %c0_0 = arith.constant 0 : index
    %0 = vector.load %arg1[%c0, %c0_0] : memref<2x160xf32, #tpu.memory_space<vmem>>, vector<2x160xf32>
    %c0_1 = arith.constant 0 : index
    %c0_2 = arith.constant 0 : index
    %1 = vector.load %arg2[%c0_1, %c0_2] : memref<160x320xf32, #tpu.memory_space<vmem>>, vector<160x320xf32>
    %cst = arith.constant dense<0.000000e+00> : vector<2x320xf32>
    %2 = tpu.matmul %0, %1, %cst {dimension_numbers = #tpu.dot_dimension_numbers<[1], [0], [0], [1], [0, 0, 1, 1], [], []>} : vector<2x160xf32>, vector<160x320xf32>, vector<2x320xf32> -> vector<2x320xf32>
    %c0_3 = arith.constant 0 : index
    %c0_4 = arith.constant 0 : index
    %3 = vector.load %arg3[%c0_3, %c0_4] : memref<1x320xf32, #tpu.memory_space<vmem>>, vector<1x320xf32>
    %4 = vector.broadcast %3 : vector<1x320xf32> to vector<2x320xf32>
    %5 = arith.addf %2, %4 : vector<2x320xf32>
    %6 = math.tanh %5 : vector<2x320xf32>
    %c0_5 = arith.constant 0 : index
    %c0_6 = arith.constant 0 : index
    %7 = vector.load %arg4[%c0_5, %c0_6] : memref<320x10xf32, #tpu.memory_space<vmem>>, vector<320x10xf32>
    %cst_7 = arith.constant dense<0.000000e+00> : vector<2x10xf32>
    %8 = tpu.matmul %6, %7, %cst_7 {dimension_numbers = #tpu.dot_dimension_numbers<[1], [0], [0], [1], [0, 0, 1, 1], [], []>} : vector<2x320xf32>, vector<320x10xf32>, vector<2x10xf32> -> vector<2x10xf32>
    %c0_8 = arith.constant 0 : index
    %c0_9 = arith.constant 0 : index
    %9 = vector.load %arg5[%c0_8, %c0_9] : memref<1x10xf32, #tpu.memory_space<vmem>>, vector<1x10xf32>
    %10 = vector.broadcast %9 : vector<1x10xf32> to vector<2x10xf32>
    %11 = arith.addf %8, %10 : vector<2x10xf32>
    %cst_10 = arith.constant dense<0xFF800000> : vector<2xf32>
    %12 = vector.multi_reduction <maximumf>, %11, %cst_10 [1] : vector<2x10xf32> to vector<2xf32>
    %13 = vector.shape_cast %12 : vector<2xf32> to vector<2x1xf32>
    %14 = vector.broadcast %13 : vector<2x1xf32> to vector<2x10xf32>
    %15 = arith.subf %11, %14 : vector<2x10xf32>
    %16 = math.exp %15 : vector<2x10xf32>
    %cst_11 = arith.constant dense<0.000000e+00> : vector<2xf32>
    %17 = vector.multi_reduction <add>, %16, %cst_11 [1] : vector<2x10xf32> to vector<2xf32>
    %18 = vector.shape_cast %17 : vector<2xf32> to vector<2x1xf32>
    %19 = tpu.reciprocal %18 {approx = true} : vector<2x1xf32> -> vector<2x1xf32>
    %20 = vector.broadcast %19 : vector<2x1xf32> to vector<2x10xf32>
    %21 = arith.mulf %16, %20 : vector<2x10xf32>
    %c0_12 = arith.constant 0 : index
    %c0_13 = arith.constant 0 : index
    %22 = vector.load %arg6[%c0_12, %c0_13] : memref<10x320xf32, #tpu.memory_space<vmem>>, vector<10x320xf32>
    %cst_14 = arith.constant dense<0.000000e+00> : vector<2x320xf32>
    %23 = tpu.matmul %21, %22, %cst_14 {dimension_numbers = #tpu.dot_dimension_numbers<[1], [0], [0], [1], [0, 0, 1, 1], [], []>} : vector<2x10xf32>, vector<10x320xf32>, vector<2x320xf32> -> vector<2x320xf32>
    %24 = arith.mulf %23, %5 : vector<2x320xf32>
    %c0_15 = arith.constant 0 : index
    %c0_16 = arith.constant 0 : index
    %25 = vector.load %arg7[%c0_15, %c0_16] : memref<320x8xf32, #tpu.memory_space<vmem>>, vector<320x8xf32>
    %cst_17 = arith.constant dense<0.000000e+00> : vector<2x8xf32>
    %26 = tpu.matmul %24, %25, %cst_17 {dimension_numbers = #tpu.dot_dimension_numbers<[1], [0], [0], [1], [0, 0, 1, 1], [], []>} : vector<2x320xf32>, vector<320x8xf32>, vector<2x8xf32> -> vector<2x8xf32>
    %c0_18 = arith.constant 0 : index
    %c0_19 = arith.constant 0 : index
    %27 = vector.load %arg8[%c0_18, %c0_19] : memref<1x8xf32, #tpu.memory_space<vmem>>, vector<1x8xf32>
    %28 = vector.broadcast %27 : vector<1x8xf32> to vector<2x8xf32>
    %29 = arith.addf %26, %28 : vector<2x8xf32>
    %c0_20 = arith.constant 0 : index
    %c0_21 = arith.constant 0 : index
    %30 = vector.load %arg9[%c0_20, %c0_21] : memref<2x8xf32, #tpu.memory_space<vmem>>, vector<2x8xf32>
    tpu.vector_store %arg9[%c0_20, %c0_21], %29 {strides = array<i32>} : memref<2x8xf32, #tpu.memory_space<vmem>>, vector<2x8xf32>,
    return
  }
  func.func @transform_0(%arg0: i32) -> (i32, i32) {
    %c0_i32 = arith.constant 0 : i32
    %c0_i32_0 = arith.constant 0 : i32
    return %arg0, %c0_i32 : i32, i32
  }
  func.func @transform_1(%arg0: i32) -> (i32, i32) {
    %c0_i32 = arith.constant 0 : i32
    %c0_i32_0 = arith.constant 0 : i32
    %c0_i32_1 = arith.constant 0 : i32
    return %c0_i32, %c0_i32_0 : i32, i32
  }
  func.func @transform_2(%arg0: i32) -> (i32, i32) {
    %c0_i32 = arith.constant 0 : i32
    %c0_i32_0 = arith.constant 0 : i32
    %c0_i32_1 = arith.constant 0 : i32
    return %c0_i32, %c0_i32_0 : i32, i32
  }
  func.func @transform_3(%arg0: i32) -> (i32, i32) {
    %c0_i32 = arith.constant 0 : i32
    %c0_i32_0 = arith.constant 0 : i32
    %c0_i32_1 = arith.constant 0 : i32
    return %c0_i32, %c0_i32_0 : i32, i32
  }
  func.func @transform_4(%arg0: i32) -> (i32, i32) {
    %c0_i32 = arith.constant 0 : i32
    %c0_i32_0 = arith.constant 0 : i32
    %c0_i32_1 = arith.constant 0 : i32
    return %c0_i32, %c0_i32_0 : i32, i32
  }
  func.func @transform_5(%arg0: i32) -> (i32, i32) {
    %c0_i32 = arith.constant 0 : i32
    %c0_i32_0 = arith.constant 0 : i32
    %c0_i32_1 = arith.constant 0 : i32
    return %c0_i32, %c0_i32_0 : i32, i32
  }
  func.func @transform_6(%arg0: i32) -> (i32, i32) {
    %c0_i32 = arith.constant 0 : i32
    %c0_i32_0 = arith.constant 0 : i32
    %c0_i32_1 = arith.constant 0 : i32
    return %c0_i32, %c0_i32_0 : i32, i32
  }
  func.func @transform_7(%arg0: i32) -> (i32, i32) {
    %c0_i32 = arith.constant 0 : i32
    %c0_i32_0 = arith.constant 0 : i32
    %c0_i32_1 = arith.constant 0 : i32
    return %c0_i32, %c0_i32_0 : i32, i32
  }
  func.func @transform_8(%arg0: i32) -> (i32, i32) {
    %c0_i32 = arith.constant 0 : i32
    %c0_i32_0 = arith.constant 0 : i32
    return %arg0, %c0_i32 : i32, i32
  }
}

</mosaic_0001>

<llo_original>
// kernel: tpu_custom_call.1
$region0: #{tpu_custom_call.1}
  #allocation0 [shape = 'u32[]', space=smem, size = 0x4, offset = 0x4, fixed_abs, tag = 'smem constant byte address 0x4 - core index']
  #allocation1 [shape = 'u32[144,128]{1,0:T(1,128)}', space=vmem, size = 0x12000, scoped, tag = 'internal scratch']
  %s0 = inlined_call_operand.vmem [shape: f32[2,160], index: 0, kind: input, shape index: {}]
  %s1 = inlined_call_operand.vmem [shape: f32[160,320], index: 1, kind: input, shape index: {}]
  %s2 = inlined_call_operand.vmem [shape: f32[1,320], index: 2, kind: input, shape index: {}]
  %s3 = inlined_call_operand.vmem [shape: f32[320,10], index: 3, kind: input, shape index: {}]
  %s4 = inlined_call_operand.vmem [shape: f32[1,10], index: 4, kind: input, shape index: {}]
  %s5 = inlined_call_operand.vmem [shape: f32[10,320], index: 5, kind: input, shape index: {}]
  %s6 = inlined_call_operand.vmem [shape: f32[320,8], index: 6, kind: input, shape index: {}]
  %s7 = inlined_call_operand.vmem [shape: f32[1,8], index: 7, kind: input, shape index: {}]
  %s8 = inlined_call_operand.hbm [shape: f32[2,8], index: 8, kind: output, shape index: {}]
  %s9 = sld [smem:[#allocation0]]
  $region42: #{tpu_custom_call.1} parent=0
    _
  %s11 = ssub.s32 1, %s9
  %s12 = scalar_select 0, %s11, %s9
  $region1: #{tpu_custom_call.1} parent=0
    #allocation2 [shape = 'u8[1024]{0}', space=vmem, size = 0x400, scoped, tag = 'output window, operand 0, single buffered']
    #allocation3 [shape = 's32[1]{0}', space=sflag, size = 0x4, scoped, tag = 'scoped memory for tpu_custom_call.1']
    %13 = vsyncpa [#allocation3], 0
    // Predicated region
    $region2: #{tpu_custom_call.1} parent=1 // pred_check
      _
    $region3: #{tpu_custom_call.1} parent=1 // pred_check_branch
      %15 = sbr.rel (0) target = $region5
    $region4: #{tpu_custom_call.1} parent=1 // pred_region
      _
    $region5: #{tpu_custom_call.1} parent=1 // pred_fallthru
      _
    // Predicated region
    $region6: #{tpu_custom_call.1} parent=1 // pred_check
      _
    $region7: #{tpu_custom_call.1} parent=1 // pred_check_branch
      %17 = sbr.rel (0) target = $region9
    $region8: #{tpu_custom_call.1} parent=1 // pred_region
      _
    $region9: #{tpu_custom_call.1} parent=1 // pred_fallthru
      _
    // Predicated region
    $region10: #{tpu_custom_call.1} parent=1 // pred_check
      _
    $region11: #{tpu_custom_call.1} parent=1 // pred_check_branch
      %19 = sbr.rel (0) target = $region13
    $region12: #{tpu_custom_call.1} parent=1 // pred_region
      _
    $region13: #{tpu_custom_call.1} parent=1 // pred_fallthru
      _
    // Predicated region
    $region14: #{tpu_custom_call.1} parent=1 // pred_check
      _
    $region15: #{tpu_custom_call.1} parent=1 // pred_check_branch
      %21 = sbr.rel (0) target = $region17
    $region16: #{tpu_custom_call.1} parent=1 // pred_region
      _
    $region17: #{tpu_custom_call.1} parent=1 // pred_fallthru
      _
    // Predicated region
    $region18: #{tpu_custom_call.1} parent=1 // pred_check
      _
    $region19: #{tpu_custom_call.1} parent=1 // pred_check_branch
      %23 = sbr.rel (0) target = $region21
    $region20: #{tpu_custom_call.1} parent=1 // pred_region
      _
    $region21: #{tpu_custom_call.1} parent=1 // pred_fallthru
      _
    // Predicated region
    $region22: #{tpu_custom_call.1} parent=1 // pred_check
      _
    $region23: #{tpu_custom_call.1} parent=1 // pred_check_branch
      %25 = sbr.rel (0) target = $region25
    $region24: #{tpu_custom_call.1} parent=1 // pred_region
      _
    $region25: #{tpu_custom_call.1} parent=1 // pred_fallthru
      _
    // Predicated region
    $region26: #{tpu_custom_call.1} parent=1 // pred_check
      _
    $region27: #{tpu_custom_call.1} parent=1 // pred_check_branch
      %27 = sbr.rel (0) target = $region29
    $region28: #{tpu_custom_call.1} parent=1 // pred_region
      _
    $region29: #{tpu_custom_call.1} parent=1 // pred_fallthru
      _
    // Predicated region
    $region30: #{tpu_custom_call.1} parent=1 // pred_check
      _
    $region31: #{tpu_custom_call.1} parent=1 // pred_check_branch
      %29 = sbr.rel (0) target = $region33
    $region32: #{tpu_custom_call.1} parent=1 // pred_region
      _
    $region33: #{tpu_custom_call.1} parent=1 // pred_fallthru
      _
    %v30 = vld [vmem:[%s0] sm:$0xf]
    %v31 = vld [vmem:[%s1] sm:$0xff]
    %v32 = vld [vmem:[%s1 + $0x8] sm:$0xff]
    %v33 = vld [vmem:[%s1 + $0x10] sm:$0xff]
    %v34 = vld [vmem:[%s1 + $0x18] sm:$0xff]
    %v35 = vld [vmem:[%s1 + $0x20] sm:$0xff]
    %v36 = vld [vmem:[%s1 + $0x28] sm:$0xff]
    %v37 = vld [vmem:[%s1 + $0x30] sm:$0xff]
    %v38 = vld [vmem:[%s1 + $0x38] sm:$0xff]
    %v39 = vld [vmem:[%s1 + $0x40] sm:$0xff]
    %v40 = vld [vmem:[%s1 + $0x48] sm:$0xff]
    %v41 = vld [vmem:[%s1 + $0x50] sm:$0xff]
    %v42 = vld [vmem:[%s1 + $0x58] sm:$0xff]
    %v43 = vld [vmem:[%s1 + $0x60] sm:$0xff]
    %v44 = vld [vmem:[%s1 + $0x68] sm:$0xff]
    %v45 = vld [vmem:[%s1 + $0x70] sm:$0xff]
    %v46 = vld [vmem:[%s1 + $0x78] sm:$0xff]
    %v47 = vld [vmem:[%s1 + $0x80] sm:$0xff]
    %v48 = vld [vmem:[%s1 + $0x88] sm:$0xff]
    %v49 = vld [vmem:[%s1 + $0x90] sm:$0xff]
    %v50 = vld [vmem:[%s1 + $0x98] sm:$0xff]
    %v51 = vld [vmem:[%s1 + $0xa0] sm:$0xff]
    %v52 = vld [vmem:[%s1 + $0xa8] sm:$0xff]
    %v53 = vld [vmem:[%s1 + $0xb0] sm:$0xff]
    %v54 = vld [vmem:[%s1 + $0xb8] sm:$0xff]
    %v55 = vld [vmem:[%s1 + $0xc0] sm:$0xff]
    %v56 = vld [vmem:[%s1 + $0xc8] sm:$0xff]
    %v57 = vld [vmem:[%s1 + $0xd0] sm:$0xff]
    %v58 = vld [vmem:[%s1 + $0xd8] sm:$0xff]
    %v59 = vld [vmem:[%s1 + $0xe0] sm:$0xff]
    %v60 = vld [vmem:[%s1 + $0xe8] sm:$0xff]
    %v61 = vld [vmem:[%s1 + $0xf0] sm:$0xff]
    %v62 = vld [vmem:[%s1 + $0xf8] sm:$0xff]
    %v63 = vld [vmem:[%s1 + $0x100] sm:$0xff]
    %v64 = vld [vmem:[%s1 + $0x108] sm:$0xff]
    %v65 = vld [vmem:[%s1 + $0x110] sm:$0xff]
    %v66 = vld [vmem:[%s1 + $0x118] sm:$0xff]
    %v67 = vld [vmem:[%s1 + $0x120] sm:$0xff]
    %v68 = vld [vmem:[%s1 + $0x128] sm:$0xff]
    %v69 = vld [vmem:[%s1 + $0x130] sm:$0xff]
    %v70 = vld [vmem:[%s1 + $0x138] sm:$0xff]
    %v71 = vld [vmem:[%s1 + $0x140] sm:$0xff]
    %v72 = vld [vmem:[%s1 + $0x148] sm:$0xff]
    %v73 = vld [vmem:[%s1 + $0x150] sm:$0xff]
    %v74 = vld [vmem:[%s1 + $0x158] sm:$0xff]
    %v75 = vld [vmem:[%s1 + $0x160] sm:$0xff]
    %v76 = vld [vmem:[%s1 + $0x168] sm:$0xff]
    %v77 = vld [vmem:[%s1 + $0x170] sm:$0xff]
    %v78 = vld [vmem:[%s1 + $0x178] sm:$0xff]
    %v79 = vld [vmem:[%s1 + $0x180] sm:$0xff]
    %v80 = vld [vmem:[%s1 + $0x188] sm:$0xff]
    %v81 = vld [vmem:[%s1 + $0x190] sm:$0xff]
    %v82 = vld [vmem:[%s1 + $0x198] sm:$0xff]
    %v83 = vld [vmem:[%s1 + $0x1a0] sm:$0xff]
    %v84 = vld [vmem:[%s1 + $0x1a8] sm:$0xff]
    %v85 = vld [vmem:[%s1 + $0x1b0] sm:$0xff]
    %v86 = vld [vmem:[%s1 + $0x1b8] sm:$0xff]
    %v87 = vld [vmem:[%s1 + $0x1c0] sm:$0xff]
    %v88 = vld [vmem:[%s1 + $0x1c8] sm:$0xff]
    %v89 = vld [vmem:[%s1 + $0x1d0] sm:$0xff]
    %v90 = vld [vmem:[%s1 + $0x1d8] sm:$0xff]
    %v91 = vld [vmem:[%s2] sm:$0x7]
    %v93 = vlaneseq
    %v94 = vshrl.u32 %v93, 7
    %v95 = vsub.s32 0, %v94
    %v96 = vrot.slane %v91, %v95
    %v97 = vlaneseq
    %v98 = vshrl.u32 %v97, 7
    %v99 = vsub.s32 1, %v98
    %v100 = vrot.slane %v91, %v99
    %v101 = vlaneseq
    %v102 = vshrl.u32 %v101, 7
    %v103 = vsub.s32 2, %v102
    %v104 = vrot.slane %v91, %v103
    %v110 = vunpack.c.l.s4 1983009808
    %v111 = vunpack.c.0.s8 %v110
    %v112 = vlaneseq
    %v113 = vshrl.u32 %v112, 7
    %v114 = vsub.s32 %v111, %v113
    %v115 = vrot.slane %v30, %v114
    %v116 = vcombine.high %v115, %v115
    %vm118 = vcmask 261120
    %v119 = vsel %vm118, %v116, 0
    %121 = vmatprep.subr.mxu0 %v32
    %122 = vmatpush1.msra.mxu0 %v31
    %123 = vmatprep.subr.mxu0 %v35
    %124 = vmatpush1.msra.mxu0 %v34
    %125 = vmatprep.subr.mxu0 %v38
    %126 = vmatpush1.msra.mxu0 %v37
    %127 = vmatprep.subr.mxu0 %v41
    %128 = vmatpush1.msra.mxu0 %v40
    %129 = vmatprep.subr.mxu0 %v44
    %130 = vmatpush1.msra.mxu0 %v43
    %131 = vmatprep.subr.mxu0 %v47
    %132 = vmatpush1.msra.mxu0 %v46
    %133 = vmatprep.subr.mxu0 %v50
    %134 = vmatpush1.msra.mxu0 %v49
    %135 = vmatprep.subr.mxu0 %v53
    %136 = vmatpush1.msra.mxu0 %v52
    %137 = vmatprep.subr.mxu0 %v56
    %138 = vmatpush1.msra.mxu0 %v55
    %139 = vmatprep.subr.mxu0 %v59
    %140 = vmatpush1.msra.mxu0 %v58
    %141 = vmatprep.subr.mxu0 %v62
    %142 = vmatpush1.msra.mxu0 %v61
    %143 = vmatprep.subr.mxu0 %v65
    %144 = vmatpush1.msra.mxu0 %v64
    %145 = vmatprep.subr.mxu0 %v68
    %146 = vmatpush1.msra.mxu0 %v67
    %147 = vmatprep.subr.mxu0 %v71
    %148 = vmatpush1.msra.mxu0 %v70
    %149 = vmatprep.subr.mxu0 %v74
    %150 = vmatpush1.msra.mxu0 %v73
    %151 = vmatprep.subr.mxu0 %v77
    %152 = vmatpush1.msra.mxu0 %v76
    %153 = vmatprep.subr.mxu0 %v80
    %154 = vmatpush1.msra.mxu0 %v79
    %155 = vmatprep.subr.mxu0 %v83
    %156 = vmatpush1.msra.mxu0 %v82
    %157 = vmatprep.subr.mxu0 %v86
    %158 = vmatpush1.msra.mxu0 %v85
    %159 = vmatprep.subr.mxu0 %v89
    %160 = vmatpush1.msra.mxu0 %v88
    %161 = vmatprep.subr.mxu0 0.0
    %162 = vmatpush1.msra.mxu0 0.0
    %163 = vmatprep.subr.mxu0 0.0
    %164 = vmatpush1.msra.mxu0 0.0
    %165 = vmatprep.subr.mxu0 0.0
    %166 = vmatpush1.msra.mxu0 0.0
    %167 = vmatprep.subr.mxu0 0.0
    %168 = vmatpush1.msra.mxu0 0.0
    %169 = vmatprep.subr.mxu0 0.0
    %170 = vmatpush1.msra.mxu0 0.0
    %171 = vmatprep.subr.mxu0 0.0
    %172 = vmatpush1.msra.mxu0 0.0
    %173 = vmatprep.subr.mxu0 0.0
    %174 = vmatpush1.msra.mxu0 0.0
    %175 = vmatprep.subr.mxu0 0.0
    %176 = vmatpush1.msra.mxu0 0.0
    %177 = vmatprep.subr.mxu0 0.0
    %178 = vmatpush1.msra.mxu0 0.0
    %179 = vmatprep.subr.mxu0 0.0
    %180 = vmatpush1.msra.mxu0 0.0
    %181 = vmatprep.subr.mxu0 0.0
    %182 = vmatpush1.msra.mxu0 0.0
    %183 = vmatprep.subr.mxu0 0.0
    %184 = vmatpush1.msra.mxu0 0.0
    %185 = vmatprep.mubr.f32.mxu0 %v119
    %186 = vmatmul.mubr.f32.gmra.mrb[0].mxu0 %v115
    %v187 = vpop.f32.mrb[0].mxu0
    %v188 = vadd.f32 %v96, %v187
    %v189 = vpop.f32.mrb[0].mxu0
    %v190 = vadd.f32 %v100, %v189
    %191 = vdwg.mxu0
    %192 = vmatprep.subr.mxu0 0.0
    %193 = vmatpush1.msra.mxu0 %v33
    %194 = vmatprep.subr.mxu0 0.0
    %195 = vmatpush1.msra.mxu0 %v36
    %196 = vmatprep.subr.mxu0 0.0
    %197 = vmatpush1.msra.mxu0 %v39
    %198 = vmatprep.subr.mxu0 0.0
    %199 = vmatpush1.msra.mxu0 %v42
    %200 = vmatprep.subr.mxu0 0.0
    %201 = vmatpush1.msra.mxu0 %v45
    %202 = vmatprep.subr.mxu0 0.0
    %203 = vmatpush1.msra.mxu0 %v48
    %204 = vmatprep.subr.mxu0 0.0
    %205 = vmatpush1.msra.mxu0 %v51
    %206 = vmatprep.subr.mxu0 0.0
    %207 = vmatpush1.msra.mxu0 %v54
    %208 = vmatprep.subr.mxu0 0.0
    %209 = vmatpush1.msra.mxu0 %v57
    %210 = vmatprep.subr.mxu0 0.0
    %211 = vmatpush1.msra.mxu0 %v60
    %212 = vmatprep.subr.mxu0 0.0
    %213 = vmatpush1.msra.mxu0 %v63
    %214 = vmatprep.subr.mxu0 0.0
    %215 = vmatpush1.msra.mxu0 %v66
    %216 = vmatprep.subr.mxu0 0.0
    %217 = vmatpush1.msra.mxu0 %v69
    %218 = vmatprep.subr.mxu0 0.0
    %219 = vmatpush1.msra.mxu0 %v72
    %220 = vmatprep.subr.mxu0 0.0
    %221 = vmatpush1.msra.mxu0 %v75
    %222 = vmatprep.subr.mxu0 0.0
    %223 = vmatpush1.msra.mxu0 %v78
    %224 = vmatprep.subr.mxu0 0.0
    %225 = vmatpush1.msra.mxu0 %v81
    %226 = vmatprep.subr.mxu0 0.0
    %227 = vmatpush1.msra.mxu0 %v84
    %228 = vmatprep.subr.mxu0 0.0
    %229 = vmatpush1.msra.mxu0 %v87
    %230 = vmatprep.subr.mxu0 0.0
    %231 = vmatpush1.msra.mxu0 %v90
    %232 = vmatprep.subr.mxu0 0.0
    %233 = vmatpush1.msra.mxu0 0.0
    %234 = vmatprep.subr.mxu0 0.0
    %235 = vmatpush1.msra.mxu0 0.0
    %236 = vmatprep.subr.mxu0 0.0
    %237 = vmatpush1.msra.mxu0 0.0
    %238 = vmatprep.subr.mxu0 0.0
    %239 = vmatpush1.msra.mxu0 0.0
    %240 = vmatprep.subr.mxu0 0.0
    %241 = vmatpush1.msra.mxu0 0.0
    %242 = vmatprep.subr.mxu0 0.0
    %243 = vmatpush1.msra.mxu0 0.0
    %244 = vmatprep.subr.mxu0 0.0
    %245 = vmatpush1.msra.mxu0 0.0
    %246 = vmatprep.subr.mxu0 0.0
    %247 = vmatpush1.msra.mxu0 0.0
    %248 = vmatprep.subr.mxu0 0.0
    %249 = vmatpush1.msra.mxu0 0.0
    %250 = vmatprep.subr.mxu0 0.0
    %251 = vmatpush1.msra.mxu0 0.0
    %252 = vmatprep.subr.mxu0 0.0
    %253 = vmatpush1.msra.mxu0 0.0
    %254 = vmatprep.subr.mxu0 0.0
    %255 = vmatpush1.msra.mxu0 0.0
    %256 = vmatprep.mubr.f32.mxu0 %v119
    %257 = vmatmul.mubr.f32.gmra.mrb[0].mxu0 %v115
    %v258 = vpop.f32.mrb[0].mxu0
    %v259 = vadd.f32 %v104, %v258
    %v260 = vpop.f32.mrb[0].mxu0
    %261 = vdwg.mxu0
    %v262 = vtanh.pop %v188
    %v263 = vtanh.pop %v190
    %v264 = vtanh.pop %v259
    %v265 = vld [vmem:[%s3] sm:$0xff]
    %v266 = vld [vmem:[%s3 + $0x8] sm:$0xff]
    %v267 = vld [vmem:[%s3 + $0x10] sm:$0xff]
    %v268 = vld [vmem:[%s3 + $0x18] sm:$0xff]
    %v269 = vld [vmem:[%s3 + $0x20] sm:$0xff]
    %v270 = vld [vmem:[%s3 + $0x28] sm:$0xff]
    %v271 = vld [vmem:[%s3 + $0x30] sm:$0xff]
    %v272 = vld [vmem:[%s3 + $0x38] sm:$0xff]
    %v273 = vld [vmem:[%s3 + $0x40] sm:$0xff]
    %v274 = vld [vmem:[%s3 + $0x48] sm:$0xff]
    %v275 = vld [vmem:[%s3 + $0x50] sm:$0xff]
    %v276 = vld [vmem:[%s3 + $0x58] sm:$0xff]
    %v277 = vld [vmem:[%s3 + $0x60] sm:$0xff]
    %v278 = vld [vmem:[%s3 + $0x68] sm:$0xff]
    %v279 = vld [vmem:[%s3 + $0x70] sm:$0xff]
    %v280 = vld [vmem:[%s3 + $0x78] sm:$0xff]
    %v281 = vld [vmem:[%s3 + $0x80] sm:$0xff]
    %v282 = vld [vmem:[%s3 + $0x88] sm:$0xff]
    %v283 = vld [vmem:[%s3 + $0x90] sm:$0xff]
    %v284 = vld [vmem:[%s3 + $0x98] sm:$0xff]
    %v285 = vld [vmem:[%s3 + $0xa0] sm:$0xff]
    %v286 = vld [vmem:[%s3 + $0xa8] sm:$0xff]
    %v287 = vld [vmem:[%s3 + $0xb0] sm:$0xff]
    %v288 = vld [vmem:[%s3 + $0xb8] sm:$0xff]
    %v289 = vld [vmem:[%s3 + $0xc0] sm:$0xff]
    %v290 = vld [vmem:[%s3 + $0xc8] sm:$0xff]
    %v291 = vld [vmem:[%s3 + $0xd0] sm:$0xff]
    %v292 = vld [vmem:[%s3 + $0xd8] sm:$0xff]
    %v293 = vld [vmem:[%s3 + $0xe0] sm:$0xff]
    %v294 = vld [vmem:[%s3 + $0xe8] sm:$0xff]
    %v295 = vld [vmem:[%s3 + $0xf0] sm:$0xff]
    %v296 = vld [vmem:[%s3 + $0xf8] sm:$0xff]
    %v297 = vld [vmem:[%s3 + $0x100] sm:$0xff]
    %v298 = vld [vmem:[%s3 + $0x108] sm:$0xff]
    %v299 = vld [vmem:[%s3 + $0x110] sm:$0xff]
    %v300 = vld [vmem:[%s3 + $0x118] sm:$0xff]
    %v301 = vld [vmem:[%s3 + $0x120] sm:$0xff]
    %v302 = vld [vmem:[%s3 + $0x128] sm:$0xff]
    %v303 = vld [vmem:[%s3 + $0x130] sm:$0xff]
    %v304 = vld [vmem:[%s3 + $0x138] sm:$0xff]
    %v305 = vld [vmem:[%s4] sm:$0x1]
    %v307 = vlaneseq
    %v308 = vshrl.u32 %v307, 7
    %v309 = vsub.s32 0, %v308
    %v310 = vrot.slane %v305, %v309
    %vm312 = vcmask 523264
    %v314 = vsel %vm312, %v264, 0
    %316 = vmatprep.subr.mxu0 0.0
    %317 = vmatpush1.msra.mxu0 %v265
    %318 = vmatprep.subr.mxu0 0.0
    %319 = vmatpush1.msra.mxu0 %v266
    %320 = vmatprep.subr.mxu0 0.0
    %321 = vmatpush1.msra.mxu0 %v267
    %322 = vmatprep.subr.mxu0 0.0
    %323 = vmatpush1.msra.mxu0 %v268
    %324 = vmatprep.subr.mxu0 0.0
    %325 = vmatpush1.msra.mxu0 %v269
    %326 = vmatprep.subr.mxu0 0.0
    %327 = vmatpush1.msra.mxu0 %v270
    %328 = vmatprep.subr.mxu0 0.0
    %329 = vmatpush1.msra.mxu0 %v271
    %330 = vmatprep.subr.mxu0 0.0
    %331 = vmatpush1.msra.mxu0 %v272
    %332 = vmatprep.subr.mxu0 0.0
    %333 = vmatpush1.msra.mxu0 %v273
    %334 = vmatprep.subr.mxu0 0.0
    %335 = vmatpush1.msra.mxu0 %v274
    %336 = vmatprep.subr.mxu0 0.0
    %337 = vmatpush1.msra.mxu0 %v275
    %338 = vmatprep.subr.mxu0 0.0
    %339 = vmatpush1.msra.mxu0 %v276
    %340 = vmatprep.subr.mxu0 0.0
    %341 = vmatpush1.msra.mxu0 %v277
    %342 = vmatprep.subr.mxu0 0.0
    %343 = vmatpush1.msra.mxu0 %v278
    %344 = vmatprep.subr.mxu0 0.0
    %345 = vmatpush1.msra.mxu0 %v279
    %346 = vmatprep.subr.mxu0 0.0
    %347 = vmatpush1.msra.mxu0 %v280
    %348 = vmatprep.subr.mxu0 0.0
    %349 = vmatpush1.msra.mxu0 %v281
    %350 = vmatprep.subr.mxu0 0.0
    %351 = vmatpush1.msra.mxu0 %v282
    %352 = vmatprep.subr.mxu0 0.0
    %353 = vmatpush1.msra.mxu0 %v283
    %354 = vmatprep.subr.mxu0 0.0
    %355 = vmatpush1.msra.mxu0 %v284
    %356 = vmatprep.subr.mxu0 0.0
    %357 = vmatpush1.msra.mxu0 %v285
    %358 = vmatprep.subr.mxu0 0.0
    %359 = vmatpush1.msra.mxu0 %v286
    %360 = vmatprep.subr.mxu0 0.0
    %361 = vmatpush1.msra.mxu0 %v287
    %362 = vmatprep.subr.mxu0 0.0
    %363 = vmatpush1.msra.mxu0 %v288
    %364 = vmatprep.subr.mxu0 0.0
    %365 = vmatpush1.msra.mxu0 %v289
    %366 = vmatprep.subr.mxu0 0.0
    %367 = vmatpush1.msra.mxu0 %v290
    %368 = vmatprep.subr.mxu0 0.0
    %369 = vmatpush1.msra.mxu0 %v291
    %370 = vmatprep.subr.mxu0 0.0
    %371 = vmatpush1.msra.mxu0 %v292
    %372 = vmatprep.subr.mxu0 0.0
    %373 = vmatpush1.msra.mxu0 %v293
    %374 = vmatprep.subr.mxu0 0.0
    %375 = vmatpush1.msra.mxu0 %v294
    %376 = vmatprep.subr.mxu0 0.0
    %377 = vmatpush1.msra.mxu0 %v295
    %378 = vmatprep.subr.mxu0 0.0
    %379 = vmatpush1.msra.mxu0 %v296
    %380 = vmatprep.mubr.f32.mxu0 %v263
    %381 = vmatmul.mubr.f32.gmra.mrb[0].mxu0 %v262
    %v382 = vpop.f32.mrb[0].mxu0
    %v383 = vadd.f32 %v310, %v382
    %v384 = vpop.f32.mrb[0].mxu0
    %385 = vdwg.mxu0
    %386 = vmatprep.subr.mxu0 0.0
    %387 = vmatpush1.msra.mxu0 %v297
    %388 = vmatprep.subr.mxu0 0.0
    %389 = vmatpush1.msra.mxu0 %v298
    %390 = vmatprep.subr.mxu0 0.0
    %391 = vmatpush1.msra.mxu0 %v299
    %392 = vmatprep.subr.mxu0 0.0
    %393 = vmatpush1.msra.mxu0 %v300
    %394 = vmatprep.subr.mxu0 0.0
    %395 = vmatpush1.msra.mxu0 %v301
    %396 = vmatprep.subr.mxu0 0.0
    %397 = vmatpush1.msra.mxu0 %v302
    %398 = vmatprep.subr.mxu0 0.0
    %399 = vmatpush1.msra.mxu0 %v303
    %400 = vmatprep.subr.mxu0 0.0
    %401 = vmatpush1.msra.mxu0 %v304
    %402 = vmatprep.subr.mxu0 0.0
    %403 = vmatpush1.msra.mxu0 0.0
    %404 = vmatprep.subr.mxu0 0.0
    %405 = vmatpush1.msra.mxu0 0.0
    %406 = vmatprep.subr.mxu0 0.0
    %407 = vmatpush1.msra.mxu0 0.0
    %408 = vmatprep.subr.mxu0 0.0
    %409 = vmatpush1.msra.mxu0 0.0
    %410 = vmatprep.subr.mxu0 0.0
    %411 = vmatpush1.msra.mxu0 0.0
    %412 = vmatprep.subr.mxu0 0.0
    %413 = vmatpush1.msra.mxu0 0.0
    %414 = vmatprep.subr.mxu0 0.0
    %415 = vmatpush1.msra.mxu0 0.0
    %416 = vmatprep.subr.mxu0 0.0
    %417 = vmatpush1.msra.mxu0 0.0
    %418 = vmatprep.subr.mxu0 0.0
    %419 = vmatpush1.msra.mxu0 0.0
    %420 = vmatprep.subr.mxu0 0.0
    %421 = vmatpush1.msra.mxu0 0.0
    %422 = vmatprep.subr.mxu0 0.0
    %423 = vmatpush1.msra.mxu0 0.0
    %424 = vmatprep.subr.mxu0 0.0
    %425 = vmatpush1.msra.mxu0 0.0
    %426 = vmatprep.subr.mxu0 0.0
    %427 = vmatpush1.msra.mxu0 0.0
    %428 = vmatprep.subr.mxu0 0.0
    %429 = vmatpush1.msra.mxu0 0.0
    %430 = vmatprep.subr.mxu0 0.0
    %431 = vmatpush1.msra.mxu0 0.0
    %432 = vmatprep.subr.mxu0 0.0
    %433 = vmatpush1.msra.mxu0 0.0
    %434 = vmatprep.subr.mxu0 0.0
    %435 = vmatpush1.msra.mxu0 0.0
    %436 = vmatprep.subr.mxu0 0.0
    %437 = vmatpush1.msra.mxu0 0.0
    %438 = vmatprep.subr.mxu0 0.0
    %439 = vmatpush1.msra.mxu0 0.0
    %440 = vmatprep.subr.mxu0 0.0
    %441 = vmatpush1.msra.mxu0 0.0
    %442 = vmatprep.subr.mxu0 0.0
    %443 = vmatpush1.msra.mxu0 0.0
    %444 = vmatprep.subr.mxu0 0.0
    %445 = vmatpush1.msra.mxu0 0.0
    %446 = vmatprep.subr.mxu0 0.0
    %447 = vmatpush1.msra.mxu0 0.0
    %448 = vmatprep.subr.mxu0 0.0
    %449 = vmatpush1.msra.mxu0 0.0
    %450 = vmatprep.mubr.f32.mxu0 0.0
    %451 = vmatmul.mubr.f32.gmra.mrb[0].mxu0 %v314
    %v452 = vpop.f32.mrb[0].mxu0
    %v453 = vadd.f32 %v383, %v452
    %v454 = vpop.f32.mrb[0].mxu0
    %455 = vdwg.mxu0
    %vm456 = vcmask 74752
    %v457 = vsel %vm456, %v453, -inf
    %458 = vmax.xlane.f32.xlu0 %v457
    %v459 = vpop.xlane.xlu0 %458
    %v460 = vsub.f32 %v453, %v459
    %v461 = vmul.f32 %v460, 1.442695
    %v462 = vpow.pop %v461
    %v463 = vsel %vm456, %v462, 0.0
    %464 = vadd.xlane.f32.xlu0 %v463
    %v465 = vpop.xlane.xlu0 %464
    %v466 = vrcp.pop %v465
    %v467 = vmul.f32 %v462, %v466
    %v468 = vld [vmem:[%s5] sm:$0xff]
    %v469 = vld [vmem:[%s5 + $0x8] sm:$0xff]
    %v470 = vld [vmem:[%s5 + $0x10] sm:$0xff]
    %v471 = vld [vmem:[%s5 + $0x18] sm:$0x3]
    %v472 = vld [vmem:[%s5 + $0x20] sm:$0x3]
    %v473 = vld [vmem:[%s5 + $0x28] sm:$0x3]
    %vm474 = vcmask 80896
    %v476 = vsel %vm474, %v467, 0
    %vm478 = vcmask 1041408
    %v480 = vsel %vm478, %v471, 0
    %v483 = vsel %vm478, %v472, 0
    %v486 = vsel %vm478, %v473, 0
    %488 = vmatprep.subr.mxu0 %v469
    %489 = vmatpush1.msra.mxu0 %v468
    %490 = vmatprep.subr.mxu0 %v483
    %491 = vmatpush1.msra.mxu0 %v480
    %492 = vmatprep.subr.mxu0 0.0
    %493 = vmatpush1.msra.mxu0 0.0
    %494 = vmatprep.subr.mxu0 0.0
    %495 = vmatpush1.msra.mxu0 0.0
    %496 = vmatprep.subr.mxu0 0.0
    %497 = vmatpush1.msra.mxu0 0.0
    %498 = vmatprep.subr.mxu0 0.0
    %499 = vmatpush1.msra.mxu0 0.0
    %500 = vmatprep.subr.mxu0 0.0
    %501 = vmatpush1.msra.mxu0 0.0
    %502 = vmatprep.subr.mxu0 0.0
    %503 = vmatpush1.msra.mxu0 0.0
    %504 = vmatprep.subr.mxu0 0.0
    %505 = vmatpush1.msra.mxu0 0.0
    %506 = vmatprep.subr.mxu0 0.0
    %507 = vmatpush1.msra.mxu0 0.0
    %508 = vmatprep.subr.mxu0 0.0
    %509 = vmatpush1.msra.mxu0 0.0
    %510 = vmatprep.subr.mxu0 0.0
    %511 = vmatpush1.msra.mxu0 0.0
    %512 = vmatprep.subr.mxu0 0.0
    %513 = vmatpush1.msra.mxu0 0.0
    %514 = vmatprep.subr.mxu0 0.0
    %515 = vmatpush1.msra.mxu0 0.0
    %516 = vmatprep.subr.mxu0 0.0
    %517 = vmatpush1.msra.mxu0 0.0
    %518 = vmatprep.subr.mxu0 0.0
    %519 = vmatpush1.msra.mxu0 0.0
    %520 = vmatprep.subr.mxu0 0.0
    %521 = vmatpush1.msra.mxu0 0.0
    %522 = vmatprep.subr.mxu0 0.0
    %523 = vmatpush1.msra.mxu0 0.0
    %524 = vmatprep.subr.mxu0 0.0
    %525 = vmatpush1.msra.mxu0 0.0
    %526 = vmatprep.subr.mxu0 0.0
    %527 = vmatpush1.msra.mxu0 0.0
    %528 = vmatprep.subr.mxu0 0.0
    %529 = vmatpush1.msra.mxu0 0.0
    %530 = vmatprep.subr.mxu0 0.0
    %531 = vmatpush1.msra.mxu0 0.0
    %532 = vmatprep.subr.mxu0 0.0
    %533 = vmatpush1.msra.mxu0 0.0
    %534 = vmatprep.subr.mxu0 0.0
    %535 = vmatpush1.msra.mxu0 0.0
    %536 = vmatprep.subr.mxu0 0.0
    %537 = vmatpush1.msra.mxu0 0.0
    %538 = vmatprep.subr.mxu0 0.0
    %539 = vmatpush1.msra.mxu0 0.0
    %540 = vmatprep.subr.mxu0 0.0
    %541 = vmatpush1.msra.mxu0 0.0
    %542 = vmatprep.subr.mxu0 0.0
    %543 = vmatpush1.msra.mxu0 0.0
    %544 = vmatprep.subr.mxu0 0.0
    %545 = vmatpush1.msra.mxu0 0.0
    %546 = vmatprep.subr.mxu0 0.0
    %547 = vmatpush1.msra.mxu0 0.0
    %548 = vmatprep.subr.mxu0 0.0
    %549 = vmatpush1.msra.mxu0 0.0
    %550 = vmatprep.subr.mxu0 0.0
    %551 = vmatpush1.msra.mxu0 0.0
    %552 = vmatprep.mubr.f32.mxu0 0.0
    %553 = vmatmul.mubr.f32.gmra.mrb[0].mxu0 %v476
    %v554 = vpop.f32.mrb[0].mxu0
    %v555 = vadd.f32 0.0, %v554
    %v556 = vpop.f32.mrb[0].mxu0
    %v557 = vadd.f32 0.0, %v556
    %558 = vdwg.mxu0
    %559 = vmatprep.subr.mxu0 0.0
    %560 = vmatpush1.msra.mxu0 %v470
    %561 = vmatprep.subr.mxu0 0.0
    %562 = vmatpush1.msra.mxu0 %v486
    %563 = vmatprep.subr.mxu0 0.0
    %564 = vmatpush1.msra.mxu0 0.0
    %565 = vmatprep.subr.mxu0 0.0
    %566 = vmatpush1.msra.mxu0 0.0
    %567 = vmatprep.subr.mxu0 0.0
    %568 = vmatpush1.msra.mxu0 0.0
    %569 = vmatprep.subr.mxu0 0.0
    %570 = vmatpush1.msra.mxu0 0.0
    %571 = vmatprep.subr.mxu0 0.0
    %572 = vmatpush1.msra.mxu0 0.0
    %573 = vmatprep.subr.mxu0 0.0
    %574 = vmatpush1.msra.mxu0 0.0
    %575 = vmatprep.subr.mxu0 0.0
    %576 = vmatpush1.msra.mxu0 0.0
    %577 = vmatprep.subr.mxu0 0.0
    %578 = vmatpush1.msra.mxu0 0.0
    %579 = vmatprep.subr.mxu0 0.0
    %580 = vmatpush1.msra.mxu0 0.0
    %581 = vmatprep.subr.mxu0 0.0
    %582 = vmatpush1.msra.mxu0 0.0
    %583 = vmatprep.subr.mxu0 0.0
    %584 = vmatpush1.msra.mxu0 0.0
    %585 = vmatprep.subr.mxu0 0.0
    %586 = vmatpush1.msra.mxu0 0.0
    %587 = vmatprep.subr.mxu0 0.0
    %588 = vmatpush1.msra.mxu0 0.0
    %589 = vmatprep.subr.mxu0 0.0
    %590 = vmatpush1.msra.mxu0 0.0
    %591 = vmatprep.subr.mxu0 0.0
    %592 = vmatpush1.msra.mxu0 0.0
    %593 = vmatprep.subr.mxu0 0.0
    %594 = vmatpush1.msra.mxu0 0.0
    %595 = vmatprep.subr.mxu0 0.0
    %596 = vmatpush1.msra.mxu0 0.0
    %597 = vmatprep.subr.mxu0 0.0
    %598 = vmatpush1.msra.mxu0 0.0
    %599 = vmatprep.subr.mxu0 0.0
    %600 = vmatpush1.msra.mxu0 0.0
    %601 = vmatprep.subr.mxu0 0.0
    %602 = vmatpush1.msra.mxu0 0.0
    %603 = vmatprep.subr.mxu0 0.0
    %604 = vmatpush1.msra.mxu0 0.0
    %605 = vmatprep.subr.mxu0 0.0
    %606 = vmatpush1.msra.mxu0 0.0
    %607 = vmatprep.subr.mxu0 0.0
    %608 = vmatpush1.msra.mxu0 0.0
    %609 = vmatprep.subr.mxu0 0.0
    %610 = vmatpush1.msra.mxu0 0.0
    %611 = vmatprep.subr.mxu0 0.0
    %612 = vmatpush1.msra.mxu0 0.0
    %613 = vmatprep.subr.mxu0 0.0
    %614 = vmatpush1.msra.mxu0 0.0
    %615 = vmatprep.subr.mxu0 0.0
    %616 = vmatpush1.msra.mxu0 0.0
    %617 = vmatprep.subr.mxu0 0.0
    %618 = vmatpush1.msra.mxu0 0.0
    %619 = vmatprep.subr.mxu0 0.0
    %620 = vmatpush1.msra.mxu0 0.0
    %621 = vmatprep.subr.mxu0 0.0
    %622 = vmatpush1.msra.mxu0 0.0
    %623 = vmatprep.mubr.f32.mxu0 0.0
    %624 = vmatmul.mubr.f32.gmra.mrb[0].mxu0 %v476
    %v625 = vpop.f32.mrb[0].mxu0
    %v626 = vadd.f32 0.0, %v625
    %v627 = vpop.f32.mrb[0].mxu0
    %628 = vdwg.mxu0
    %v629 = vmul.f32 %v555, %v188
    %v630 = vmul.f32 %v557, %v190
    %v631 = vmul.f32 %v626, %v259
    %v632 = vld [vmem:[%s6] sm:$0xff]
    %v633 = vld [vmem:[%s6 + $0x8] sm:$0xff]
    %v634 = vld [vmem:[%s6 + $0x10] sm:$0xff]
    %v635 = vld [vmem:[%s6 + $0x18] sm:$0xff]
    %v636 = vld [vmem:[%s6 + $0x20] sm:$0xff]
    %v637 = vld [vmem:[%s6 + $0x28] sm:$0xff]
    %v638 = vld [vmem:[%s6 + $0x30] sm:$0xff]
    %v639 = vld [vmem:[%s6 + $0x38] sm:$0xff]
    %v640 = vld [vmem:[%s6 + $0x40] sm:$0xff]
    %v641 = vld [vmem:[%s6 + $0x48] sm:$0xff]
    %v642 = vld [vmem:[%s6 + $0x50] sm:$0xff]
    %v643 = vld [vmem:[%s6 + $0x58] sm:$0xff]
    %v644 = vld [vmem:[%s6 + $0x60] sm:$0xff]
    %v645 = vld [vmem:[%s6 + $0x68] sm:$0xff]
    %v646 = vld [vmem:[%s6 + $0x70] sm:$0xff]
    %v647 = vld [vmem:[%s6 + $0x78] sm:$0xff]
    %v648 = vld [vmem:[%s6 + $0x80] sm:$0xff]
    %v649 = vld [vmem:[%s6 + $0x88] sm:$0xff]
    %v650 = vld [vmem:[%s6 + $0x90] sm:$0xff]
    %v651 = vld [vmem:[%s6 + $0x98] sm:$0xff]
    %v652 = vld [vmem:[%s6 + $0xa0] sm:$0xff]
    %v653 = vld [vmem:[%s6 + $0xa8] sm:$0xff]
    %v654 = vld [vmem:[%s6 + $0xb0] sm:$0xff]
    %v655 = vld [vmem:[%s6 + $0xb8] sm:$0xff]
    %v656 = vld [vmem:[%s6 + $0xc0] sm:$0xff]
    %v657 = vld [vmem:[%s6 + $0xc8] sm:$0xff]
    %v658 = vld [vmem:[%s6 + $0xd0] sm:$0xff]
    %v659 = vld [vmem:[%s6 + $0xd8] sm:$0xff]
    %v660 = vld [vmem:[%s6 + $0xe0] sm:$0xff]
    %v661 = vld [vmem:[%s6 + $0xe8] sm:$0xff]
    %v662 = vld [vmem:[%s6 + $0xf0] sm:$0xff]
    %v663 = vld [vmem:[%s6 + $0xf8] sm:$0xff]
    %v664 = vld [vmem:[%s6 + $0x100] sm:$0xff]
    %v665 = vld [vmem:[%s6 + $0x108] sm:$0xff]
    %v666 = vld [vmem:[%s6 + $0x110] sm:$0xff]
    %v667 = vld [vmem:[%s6 + $0x118] sm:$0xff]
    %v668 = vld [vmem:[%s6 + $0x120] sm:$0xff]
    %v669 = vld [vmem:[%s6 + $0x128] sm:$0xff]
    %v670 = vld [vmem:[%s6 + $0x130] sm:$0xff]
    %v671 = vld [vmem:[%s6 + $0x138] sm:$0xff]
    %v672 = vld [vmem:[%s7] sm:$0x1]
    %v674 = vlaneseq
    %v675 = vshrl.u32 %v674, 7
    %v676 = vsub.s32 0, %v675
    %v677 = vrot.slane %v672, %v676
    %v680 = vsel %vm312, %v631, 0
    %682 = vmatprep.subr.mxu0 0.0
    %683 = vmatpush1.msra.mxu0 %v632
    %684 = vmatprep.subr.mxu0 0.0
    %685 = vmatpush1.msra.mxu0 %v633
    %686 = vmatprep.subr.mxu0 0.0
    %687 = vmatpush1.msra.mxu0 %v634
    %688 = vmatprep.subr.mxu0 0.0
    %689 = vmatpush1.msra.mxu0 %v635
    %690 = vmatprep.subr.mxu0 0.0
    %691 = vmatpush1.msra.mxu0 %v636
    %692 = vmatprep.subr.mxu0 0.0
    %693 = vmatpush1.msra.mxu0 %v637
    %694 = vmatprep.subr.mxu0 0.0
    %695 = vmatpush1.msra.mxu0 %v638
    %696 = vmatprep.subr.mxu0 0.0
    %697 = vmatpush1.msra.mxu0 %v639
    %698 = vmatprep.subr.mxu0 0.0
    %699 = vmatpush1.msra.mxu0 %v640
    %700 = vmatprep.subr.mxu0 0.0
    %701 = vmatpush1.msra.mxu0 %v641
    %702 = vmatprep.subr.mxu0 0.0
    %703 = vmatpush1.msra.mxu0 %v642
    %704 = vmatprep.subr.mxu0 0.0
    %705 = vmatpush1.msra.mxu0 %v643
    %706 = vmatprep.subr.mxu0 0.0
    %707 = vmatpush1.msra.mxu0 %v644
    %708 = vmatprep.subr.mxu0 0.0
    %709 = vmatpush1.msra.mxu0 %v645
    %710 = vmatprep.subr.mxu0 0.0
    %711 = vmatpush1.msra.mxu0 %v646
    %712 = vmatprep.subr.mxu0 0.0
    %713 = vmatpush1.msra.mxu0 %v647
    %714 = vmatprep.subr.mxu0 0.0
    %715 = vmatpush1.msra.mxu0 %v648
    %716 = vmatprep.subr.mxu0 0.0
    %717 = vmatpush1.msra.mxu0 %v649
    %718 = vmatprep.subr.mxu0 0.0
    %719 = vmatpush1.msra.mxu0 %v650
    %720 = vmatprep.subr.mxu0 0.0
    %721 = vmatpush1.msra.mxu0 %v651
    %722 = vmatprep.subr.mxu0 0.0
    %723 = vmatpush1.msra.mxu0 %v652
    %724 = vmatprep.subr.mxu0 0.0
    %725 = vmatpush1.msra.mxu0 %v653
    %726 = vmatprep.subr.mxu0 0.0
    %727 = vmatpush1.msra.mxu0 %v654
    %728 = vmatprep.subr.mxu0 0.0
    %729 = vmatpush1.msra.mxu0 %v655
    %730 = vmatprep.subr.mxu0 0.0
    %731 = vmatpush1.msra.mxu0 %v656
    %732 = vmatprep.subr.mxu0 0.0
    %733 = vmatpush1.msra.mxu0 %v657
    %734 = vmatprep.subr.mxu0 0.0
    %735 = vmatpush1.msra.mxu0 %v658
    %736 = vmatprep.subr.mxu0 0.0
    %737 = vmatpush1.msra.mxu0 %v659
    %738 = vmatprep.subr.mxu0 0.0
    %739 = vmatpush1.msra.mxu0 %v660
    %740 = vmatprep.subr.mxu0 0.0
    %741 = vmatpush1.msra.mxu0 %v661
    %742 = vmatprep.subr.mxu0 0.0
    %743 = vmatpush1.msra.mxu0 %v662
    %744 = vmatprep.subr.mxu0 0.0
    %745 = vmatpush1.msra.mxu0 %v663
    %746 = vmatprep.mubr.f32.mxu0 %v630
    %747 = vmatmul.mubr.f32.gmra.mrb[0].mxu0 %v629
    %v748 = vpop.f32.mrb[0].mxu0
    %v749 = vadd.f32 %v677, %v748
    %v750 = vpop.f32.mrb[0].mxu0
    %751 = vdwg.mxu0
    %752 = vmatprep.subr.mxu0 0.0
    %753 = vmatpush1.msra.mxu0 %v664
    %754 = vmatprep.subr.mxu0 0.0
    %755 = vmatpush1.msra.mxu0 %v665
    %756 = vmatprep.subr.mxu0 0.0
    %757 = vmatpush1.msra.mxu0 %v666
    %758 = vmatprep.subr.mxu0 0.0
    %759 = vmatpush1.msra.mxu0 %v667
    %760 = vmatprep.subr.mxu0 0.0
    %761 = vmatpush1.msra.mxu0 %v668
    %762 = vmatprep.subr.mxu0 0.0
    %763 = vmatpush1.msra.mxu0 %v669
    %764 = vmatprep.subr.mxu0 0.0
    %765 = vmatpush1.msra.mxu0 %v670
    %766 = vmatprep.subr.mxu0 0.0
    %767 = vmatpush1.msra.mxu0 %v671
    %768 = vmatprep.subr.mxu0 0.0
    %769 = vmatpush1.msra.mxu0 0.0
    %770 = vmatprep.subr.mxu0 0.0
    %771 = vmatpush1.msra.mxu0 0.0
    %772 = vmatprep.subr.mxu0 0.0
    %773 = vmatpush1.msra.mxu0 0.0
    %774 = vmatprep.subr.mxu0 0.0
    %775 = vmatpush1.msra.mxu0 0.0
    %776 = vmatprep.subr.mxu0 0.0
    %777 = vmatpush1.msra.mxu0 0.0
    %778 = vmatprep.subr.mxu0 0.0
    %779 = vmatpush1.msra.mxu0 0.0
    %780 = vmatprep.subr.mxu0 0.0
    %781 = vmatpush1.msra.mxu0 0.0
    %782 = vmatprep.subr.mxu0 0.0
    %783 = vmatpush1.msra.mxu0 0.0
    %784 = vmatprep.subr.mxu0 0.0
    %785 = vmatpush1.msra.mxu0 0.0
    %786 = vmatprep.subr.mxu0 0.0
    %787 = vmatpush1.msra.mxu0 0.0
    %788 = vmatprep.subr.mxu0 0.0
    %789 = vmatpush1.msra.mxu0 0.0
    %790 = vmatprep.subr.mxu0 0.0
    %791 = vmatpush1.msra.mxu0 0.0
    %792 = vmatprep.subr.mxu0 0.0
    %793 = vmatpush1.msra.mxu0 0.0
    %794 = vmatprep.subr.mxu0 0.0
    %795 = vmatpush1.msra.mxu0 0.0
    %796 = vmatprep.subr.mxu0 0.0
    %797 = vmatpush1.msra.mxu0 0.0
    %798 = vmatprep.subr.mxu0 0.0
    %799 = vmatpush1.msra.mxu0 0.0
    %800 = vmatprep.subr.mxu0 0.0
    %801 = vmatpush1.msra.mxu0 0.0
    %802 = vmatprep.subr.mxu0 0.0
    %803 = vmatpush1.msra.mxu0 0.0
    %804 = vmatprep.subr.mxu0 0.0
    %805 = vmatpush1.msra.mxu0 0.0
    %806 = vmatprep.subr.mxu0 0.0
    %807 = vmatpush1.msra.mxu0 0.0
    %808 = vmatprep.subr.mxu0 0.0
    %809 = vmatpush1.msra.mxu0 0.0
    %810 = vmatprep.subr.mxu0 0.0
    %811 = vmatpush1.msra.mxu0 0.0
    %812 = vmatprep.subr.mxu0 0.0
    %813 = vmatpush1.msra.mxu0 0.0
    %814 = vmatprep.subr.mxu0 0.0
    %815 = vmatpush1.msra.mxu0 0.0
    %816 = vmatprep.mubr.f32.mxu0 0.0
    %817 = vmatmul.mubr.f32.gmra.mrb[0].mxu0 %v680
    %v818 = vpop.f32.mrb[0].mxu0
    %v819 = vadd.f32 %v749, %v818
    %v820 = vpop.f32.mrb[0].mxu0
    %821 = vdwg.mxu0
    %vm822 = vcmask 58368
    %823 = vst.msk [vmem:[#allocation2] sm:$0x3] %vm822, %v819
    // Predicated region
    $region34: #{tpu_custom_call.1} parent=1 // pred_check
      _
    $region35: #{tpu_custom_call.1} parent=1 // pred_check_branch
      %825 = sbr.rel (0) target = $region37
    $region36: #{tpu_custom_call.1} parent=1 // pred_region
      %s827 = ssub.s32 32, 32
      %828 = vsyncadd [#allocation3], %s827
      %s830 = sshll.u32 [#allocation2], 4
      %s831 = int_to_ptr.vmem [resolvable:$true] %s830
      %833 = dma.vmem_to_hbm [thread:$0]  %s831, 32, %s8, [#allocation3]
    $region37: #{tpu_custom_call.1} parent=1 // pred_fallthru
      _
    // Predicated region
    $region38: #{tpu_custom_call.1} parent=1 // pred_check
      _
    $region39: #{tpu_custom_call.1} parent=1 // pred_check_branch
      %835 = sbr.rel (0) target = $region41
    $region40: #{tpu_custom_call.1} parent=1 // pred_region
      %836 = dma.done [#allocation3], 32
    $region41: #{tpu_custom_call.1} parent=1 // pred_fallthru
      _
    %837 = vsyncpa [#allocation3], 1

</llo_original>
